<compile_context>
chip_gen: v7x
topology: tpu7x:2x2x1
jax: 0.10.0
libtpu: 0.0.40
codegen_flags: <defaults>
</compile_context>

<pallas_src>
import jax
import jax.numpy as jnp
import numpy as np
from jax import lax
from jax.experimental import pallas as pl
from jax.experimental.pallas import tpu as pltpu

NEG_SLOPE = 0.01   # LeakyReLU negative_slope
EPS = 1e-5         # BatchNorm eps


def _conv_bn_lrelu_kernel(x_ref, w_ref, shift_ref, o_ref):
    # x_ref    : (Nb, H, W*Cin)      channels-last rows (compute dtype, bf16)
    # w_ref    : (3, W*Cin, W*Cout)  banded folded weights, one band per kh tap
    # shift_ref: (1, W*Cout)         f32 folded conv-bias + BN shift, tiled per pixel
    # o_ref    : (Nb, H, W*Cout)     lane-dense output rows
    Nb, H, _ = x_ref.shape
    cdt = x_ref.dtype

    # Per-tap weight bands + shift, loaded once per grid step (hoisted out of the
    # batch loop).
    w0 = w_ref[0]
    w1 = w_ref[1]
    w2 = w_ref[2]
    shift = shift_ref[...]                                  # (1, W*Cout) f32

    # 0/1 row-shift matrices:  (s_dn @ x)[h] = x[h-1] (zero halo row at h=0),
    #                          (s_up @ x)[h] = x[h+1] (zero halo row at h=H-1).
    # Doing the vertical halo as tiny MXU matmuls avoids any padded scratch copy,
    # sublane-unaligned slices/concats and XLU-roll direction pitfalls; selection by
    # 0/1 weights is exact.
    row = lax.broadcasted_iota(jnp.int32, (H, H), 0)
    col = lax.broadcasted_iota(jnp.int32, (H, H), 1)
    s_dn = jnp.where(row == col + 1, 1.0, 0.0).astype(cdt)  # subdiagonal ones
    s_up = jnp.where(col == row + 1, 1.0, 0.0).astype(cdt)  # superdiagonal ones

    for b in range(Nb):                                     # Nb static -> unrolled
        xb = x_ref[b]                                       # (H, W*Cin)
        xb_dn = jnp.dot(s_dn, xb, preferred_element_type=jnp.float32).astype(cdt)
        xb_up = jnp.dot(s_up, xb, preferred_element_type=jnp.float32).astype(cdt)

        # 3x3 conv as 3 row-tap matmuls (K = W*Cin, N = W*Cout) against banded
        # weights (the kw taps and the W-direction zero padding live in the band
        # structure).  Center tap initializes the accumulator — no zeros + add.
        acc = jnp.dot(xb, w1, preferred_element_type=jnp.float32)
        acc = acc + jnp.dot(xb_dn, w0, preferred_element_type=jnp.float32)
        acc = acc + jnp.dot(xb_up, w2, preferred_element_type=jnp.float32)

        # Folded conv bias + eval-mode BatchNorm shift, then LeakyReLU, in f32.
        y = acc + shift
        o_ref[b] = jnp.where(y >= 0.0, y, NEG_SLOPE * y).astype(o_ref.dtype)


def _vmem_capacity_bytes():
    """Generation-aware VMEM capacity (v5e/v6e: 128 MiB, v7x: 64 MiB)."""
    try:
        return int(pltpu.get_tpu_info().vmem_capacity_bytes)
    except Exception:
        return 64 << 20   # conservative fallback = v7x physical VMEM


def _pick_batch_block(N, H, W, Cin, Cout, in_bytes, out_bytes, w_bytes, shift_bytes,
                      vmem_cap):
    """Largest divisor of N that (a) leaves >= min(N, 4) grid steps for pipelining and
    megacore sharding and (b) fits double-buffered in/out blocks + the resident
    weight band inside a safe fraction of this generation's VMEM."""
    min_steps = min(N, 4)
    nb = max(1, N // min_steps)
    budget = int(0.5 * vmem_cap)                 # headroom for compiler temporaries
    resident = 2 * (w_bytes + shift_bytes)       # conservatively count double buffers

    def step_bytes(n_b):
        return n_b * (2 * H * W * Cin * in_bytes + 2 * H * W * Cout * out_bytes)

    while nb > 1 and (N % nb != 0 or resident + step_bytes(nb) > budget):
        nb -= 1
    return nb


def conv_dropout_norm_nonlin_nhwc(x_nhwc, weight, bias, gamma, beta,
                                  running_mean, running_var, *,
                                  compute_dtype=jnp.bfloat16, out_dtype=None):
    """NHWC-native fused block. x_nhwc: (N,H,W,Cin), weight OIHW: (Cout,Cin,3,3).
    Stacked nnU-Net blocks should pass/keep bf16 activations and out_dtype=bf16."""
    N, H, W, Cin = x_nhwc.shape
    Cout = weight.shape[0]
    out_dtype = x_nhwc.dtype if out_dtype is None else out_dtype

    # Fold conv bias and eval-mode BN into the weights / a single per-channel shift.
    scale = gamma.astype(jnp.float32) * lax.rsqrt(running_var.astype(jnp.float32) + EPS)
    shift = (beta.astype(jnp.float32)
             - running_mean.astype(jnp.float32) * scale
             + bias.astype(jnp.float32) * scale)                       # (Cout,)

    # Banded weight matrices, one (W*Cin, W*Cout) band per kh tap:
    #   band[kh][(j+kw-1)*Cin + ci, j*Cout + co] = weight[co,ci,kh,kw] * scale[co]
    # (out-of-range j+kw-1 entries are simply absent => W-direction zero padding).
    wt = jnp.transpose(weight, (2, 3, 1, 0)).astype(jnp.float32) * scale   # (3,3,Cin,Cout)
    bands = []
    for kh in range(3):
        b = jnp.zeros((W * Cin, W * Cout), jnp.float32)
        for kw in range(3):
            b = b + jnp.kron(jnp.eye(W, W, k=1 - kw, dtype=jnp.float32), wt[kh, kw])
        bands.append(b)
    w_banded = jnp.stack(bands, axis=0).astype(compute_dtype)          # (3, W*Cin, W*Cout)

    shift_row = jnp.tile(shift, W).reshape(1, W * Cout)                 # (1, W*Cout) f32
    # Free reshape: lane-dense input rows; bf16 cast halves the kernel's HBM reads
    # (a no-op when the caller already supplies bf16 activations).
    x_rows = x_nhwc.reshape(N, H, W * Cin).astype(compute_dtype)

    in_bytes = jnp.dtype(compute_dtype).itemsize
    out_bytes = jnp.dtype(out_dtype).itemsize
    vmem_cap = _vmem_capacity_bytes()
    Nb = _pick_batch_block(N, H, W, Cin, Cout, in_bytes, out_bytes,
                           w_bytes=3 * (W * Cin) * (W * Cout) * in_bytes,
                           shift_bytes=W * Cout * 4,
                           vmem_cap=vmem_cap)

    out_rows = pl.pallas_call(
        _conv_bn_lrelu_kernel,
        out_shape=jax.ShapeDtypeStruct((N, H, W * Cout), out_dtype),
        grid_spec=pltpu.PrefetchScalarGridSpec(
            num_scalar_prefetch=0,
            grid=(N // Nb,),
            in_specs=[
                pl.BlockSpec((Nb, H, W * Cin), lambda n: (n, 0, 0)),
                pl.BlockSpec((3, W * Cin, W * Cout), lambda n: (0, 0, 0)),
                pl.BlockSpec((1, W * Cout), lambda n: (0, 0)),
            ],
            out_specs=pl.BlockSpec((Nb, H, W * Cout), lambda n: (n, 0, 0)),
        ),
        compiler_params=pltpu.CompilerParams(
            dimension_semantics=("parallel",),
            vmem_limit_bytes=min(int(0.75 * vmem_cap), 100 * 1024 * 1024)),
    )(x_rows, w_banded, shift_row)

    return out_rows.reshape(N, H, W, Cout)


@jax.jit
def conv_dropout_norm_nonlin(x_nchw, weight, bias, gamma, beta,
                             running_mean, running_var):
    """NCHW public interface for PyTorch parity. A stacked nnU-Net block chain should
    stay NHWC/bf16 and call conv_dropout_norm_nonlin_nhwc directly so these two
    transposes (full HBM passes) disappear."""
    x_nhwc = jnp.transpose(x_nchw, (0, 2, 3, 1))
    y = conv_dropout_norm_nonlin_nhwc(x_nhwc, weight, bias, gamma, beta,
                                      running_mean, running_var)
    return jnp.transpose(y, (0, 3, 1, 2))


def _reference(x_nchw, weight, bias, gamma, beta, running_mean, running_var):
    """Plain-JAX f32 reference (eval-mode semantics, matches the fused kernel)."""
    y = jax.lax.conv_general_dilated(
        x_nchw, weight, window_strides=(1, 1), padding=((1, 1), (1, 1)),
        dimension_numbers=("NCHW", "OIHW", "NCHW"))
    y = y + bias[None, :, None, None]
    scale = gamma / jnp.sqrt(running_var + EPS)
    shift = beta - running_mean * scale
    y = y * scale[None, :, None, None] + shift[None, :, None, None]
    return jnp.where(y >= 0, y, NEG_SLOPE * y)


if __name__ == "__main__":
    # Module config: input_channels=4, output_channels=8, kernel_size=3, pad=1, bias=True.
    N, Cin, Cout, H, W = 2, 4, 8, 16, 16

    key = jax.random.PRNGKey(0)
    kx, kw, kb, kg, kbe, km, kv = jax.random.split(key, 7)

    x = jax.random.normal(kx, (N, Cin, H, W), dtype=jnp.float32)
    weight = 0.1 * jax.random.normal(kw, (Cout, Cin, 3, 3), dtype=jnp.float32)
    bias = 0.1 * jax.random.normal(kb, (Cout,), dtype=jnp.float32)
    gamma = 1.0 + 0.1 * jax.random.normal(kg, (Cout,), dtype=jnp.float32)
    beta = 0.1 * jax.random.normal(kbe, (Cout,), dtype=jnp.float32)
    running_mean = 0.1 * jax.random.normal(km, (Cout,), dtype=jnp.float32)
    running_var = 1.0 + 0.1 * jax.random.uniform(kv, (Cout,), dtype=jnp.float32)

    out = conv_dropout_norm_nonlin(x, weight, bias, gamma, beta,
                                   running_mean, running_var)
    out = jax.block_until_ready(out)

    ref = _reference(x, weight, bias, gamma, beta, running_mean, running_var)
    # Tolerance reflects bf16 inputs/weights (f32 accumulation & epilogue) vs the
    # f32 reference; bf16 rounding gives ~1e-3 relative error on this data.
    np.testing.assert_allclose(np.asarray(out), np.asarray(ref),
                               rtol=2e-2, atol=2e-2)
    print("KERNEL_OK")
</pallas_src>

<mosaic_0001>
module attributes {stable_mosaic.version = 11 : i64} {
  func.func @_conv_bn_lrelu_kernel(%arg0: i32, %arg1: memref<1x16x64xbf16, #tpu.memory_space<vmem>>, %arg2: memref<3x64x128xbf16, #tpu.memory_space<vmem>>, %arg3: memref<1x128xf32, #tpu.memory_space<vmem>>, %arg4: memref<1x16x128xf32, #tpu.memory_space<vmem>>) attributes {dimension_semantics = [#tpu.dimension_semantics<parallel>], iteration_bounds = array<i64: 2>, scalar_prefetch = 0 : i64, scratch_operands = 0 : i64, tpu.core_type = #tpu.core_type<tc>, window_params = [{transform_indices = @transform_0, window_bounds = array<i64: 1, 16, 64>}, {pipeline_mode = #tpu.pipeline_mode<synchronous>, transform_indices = @transform_1, window_bounds = array<i64: 3, 64, 128>}, {pipeline_mode = #tpu.pipeline_mode<synchronous>, transform_indices = @transform_2, window_bounds = array<i64: 1, 128>}, {transform_indices = @transform_3, window_bounds = array<i64: 1, 16, 128>}]} {
    %c0 = arith.constant 0 : index
    %c0_0 = arith.constant 0 : index
    %c0_1 = arith.constant 0 : index
    %0 = vector.load %arg2[%c0, %c0_0, %c0_1] : memref<3x64x128xbf16, #tpu.memory_space<vmem>>, vector<1x64x128xbf16>
    %1 = vector.shape_cast %0 : vector<1x64x128xbf16> to vector<64x128xbf16>
    %c1 = arith.constant 1 : index
    %c0_2 = arith.constant 0 : index
    %c0_3 = arith.constant 0 : index
    %2 = vector.load %arg2[%c1, %c0_2, %c0_3] : memref<3x64x128xbf16, #tpu.memory_space<vmem>>, vector<1x64x128xbf16>
    %3 = vector.shape_cast %2 : vector<1x64x128xbf16> to vector<64x128xbf16>
    %c2 = arith.constant 2 : index
    %c0_4 = arith.constant 0 : index
    %c0_5 = arith.constant 0 : index
    %4 = vector.load %arg2[%c2, %c0_4, %c0_5] : memref<3x64x128xbf16, #tpu.memory_space<vmem>>, vector<1x64x128xbf16>
    %5 = vector.shape_cast %4 : vector<1x64x128xbf16> to vector<64x128xbf16>
    %c0_6 = arith.constant 0 : index
    %c0_7 = arith.constant 0 : index
    %6 = vector.load %arg3[%c0_6, %c0_7] : memref<1x128xf32, #tpu.memory_space<vmem>>, vector<1x128xf32>
    %7 = tpu.iota {dimensions = array<i32: 0>} : vector<16x16xi32>
    %8 = tpu.iota {dimensions = array<i32: 1>} : vector<16x16xi32>
    %c1_i32 = arith.constant 1 : i32
    %9 = vector.broadcast %c1_i32 : i32 to vector<16x16xi32>
    %10 = arith.addi %8, %9 : vector<16x16xi32>
    %11 = arith.cmpi eq, %7, %10 : vector<16x16xi32>
    %cst = arith.constant 1.000000e+00 : f32
    %cst_8 = arith.constant 0.000000e+00 : f32
    %12 = vector.broadcast %cst : f32 to vector<16x16xf32>
    %13 = vector.broadcast %cst_8 : f32 to vector<16x16xf32>
    %14 = arith.select %11, %12, %13 : vector<16x16xi1>, vector<16x16xf32>
    %15 = arith.truncf %14 : vector<16x16xf32> to vector<16x16xbf16>
    %c1_i32_9 = arith.constant 1 : i32
    %16 = vector.broadcast %c1_i32_9 : i32 to vector<16x16xi32>
    %17 = arith.addi %7, %16 : vector<16x16xi32>
    %18 = arith.cmpi eq, %8, %17 : vector<16x16xi32>
    %cst_10 = arith.constant 1.000000e+00 : f32
    %cst_11 = arith.constant 0.000000e+00 : f32
    %19 = vector.broadcast %cst_10 : f32 to vector<16x16xf32>
    %20 = vector.broadcast %cst_11 : f32 to vector<16x16xf32>
    %21 = arith.select %18, %19, %20 : vector<16x16xi1>, vector<16x16xf32>
    %22 = arith.truncf %21 : vector<16x16xf32> to vector<16x16xbf16>
    %c0_12 = arith.constant 0 : index
    %c0_13 = arith.constant 0 : index
    %c0_14 = arith.constant 0 : index
    %23 = vector.load %arg1[%c0_12, %c0_13, %c0_14] : memref<1x16x64xbf16, #tpu.memory_space<vmem>>, vector<1x16x64xbf16>
    %24 = vector.shape_cast %23 : vector<1x16x64xbf16> to vector<16x64xbf16>
    %cst_15 = arith.constant dense<0.000000e+00> : vector<16x64xf32>
    %25 = tpu.matmul %15, %24, %cst_15 {dimension_numbers = #tpu.dot_dimension_numbers<[1], [0], [0], [1], [0, 0, 1, 1], [], []>} : vector<16x16xbf16>, vector<16x64xbf16>, vector<16x64xf32> -> vector<16x64xf32>
    %26 = arith.truncf %25 : vector<16x64xf32> to vector<16x64xbf16>
    %cst_16 = arith.constant dense<0.000000e+00> : vector<16x64xf32>
    %27 = tpu.matmul %22, %24, %cst_16 {dimension_numbers = #tpu.dot_dimension_numbers<[1], [0], [0], [1], [0, 0, 1, 1], [], []>} : vector<16x16xbf16>, vector<16x64xbf16>, vector<16x64xf32> -> vector<16x64xf32>
    %28 = arith.truncf %27 : vector<16x64xf32> to vector<16x64xbf16>
    %cst_17 = arith.constant dense<0.000000e+00> : vector<16x128xf32>
    %29 = tpu.matmul %24, %3, %cst_17 {dimension_numbers = #tpu.dot_dimension_numbers<[1], [0], [0], [1], [0, 0, 1, 1], [], []>} : vector<16x64xbf16>, vector<64x128xbf16>, vector<16x128xf32> -> vector<16x128xf32>
    %cst_18 = arith.constant dense<0.000000e+00> : vector<16x128xf32>
    %30 = tpu.matmul %26, %1, %cst_18 {dimension_numbers = #tpu.dot_dimension_numbers<[1], [0], [0], [1], [0, 0, 1, 1], [], []>} : vector<16x64xbf16>, vector<64x128xbf16>, vector<16x128xf32> -> vector<16x128xf32>
    %31 = arith.addf %29, %30 : vector<16x128xf32>
    %cst_19 = arith.constant dense<0.000000e+00> : vector<16x128xf32>
    %32 = tpu.matmul %28, %5, %cst_19 {dimension_numbers = #tpu.dot_dimension_numbers<[1], [0], [0], [1], [0, 0, 1, 1], [], []>} : vector<16x64xbf16>, vector<64x128xbf16>, vector<16x128xf32> -> vector<16x128xf32>
    %33 = arith.addf %31, %32 : vector<16x128xf32>
    %34 = vector.broadcast %6 : vector<1x128xf32> to vector<16x128xf32>
    %35 = arith.addf %33, %34 : vector<16x128xf32>
    %cst_20 = arith.constant 0.000000e+00 : f32
    %36 = vector.broadcast %cst_20 : f32 to vector<16x128xf32>
    %37 = arith.cmpf oge, %35, %36 : vector<16x128xf32>
    %cst_21 = arith.constant 0.00999999977 : f32
    %38 = vector.broadcast %cst_21 : f32 to vector<16x128xf32>
    %39 = arith.mulf %38, %35 : vector<16x128xf32>
    %40 = arith.select %37, %35, %39 : vector<16x128xi1>, vector<16x128xf32>
    %c0_22 = arith.constant 0 : index
    %c0_23 = arith.constant 0 : index
    %c0_24 = arith.constant 0 : index
    %41 = vector.load %arg4[%c0_22, %c0_23, %c0_24] : memref<1x16x128xf32, #tpu.memory_space<vmem>>, vector<1x16x128xf32>
    %42 = vector.shape_cast %41 : vector<1x16x128xf32> to vector<16x128xf32>
    %43 = vector.shape_cast %40 : vector<16x128xf32> to vector<1x16x128xf32>
    tpu.vector_store %arg4[%c0_22, %c0_23, %c0_24], %43 {strides = array<i32>} : memref<1x16x128xf32, #tpu.memory_space<vmem>>, vector<1x16x128xf32>,
    return
  }
  func.func @transform_0(%arg0: i32) -> (i32, i32, i32) {
    %c0_i32 = arith.constant 0 : i32
    %c0_i32_0 = arith.constant 0 : i32
    %c0_i32_1 = arith.constant 0 : i32
    return %arg0, %c0_i32, %c0_i32_0 : i32, i32, i32
  }
  func.func @transform_1(%arg0: i32) -> (i32, i32, i32) {
    %c0_i32 = arith.constant 0 : i32
    %c0_i32_0 = arith.constant 0 : i32
    %c0_i32_1 = arith.constant 0 : i32
    %c0_i32_2 = arith.constant 0 : i32
    return %c0_i32, %c0_i32_0, %c0_i32_1 : i32, i32, i32
  }
  func.func @transform_2(%arg0: i32) -> (i32, i32) {
    %c0_i32 = arith.constant 0 : i32
    %c0_i32_0 = arith.constant 0 : i32
    %c0_i32_1 = arith.constant 0 : i32
    return %c0_i32, %c0_i32_0 : i32, i32
  }
  func.func @transform_3(%arg0: i32) -> (i32, i32, i32) {
    %c0_i32 = arith.constant 0 : i32
    %c0_i32_0 = arith.constant 0 : i32
    %c0_i32_1 = arith.constant 0 : i32
    return %arg0, %c0_i32, %c0_i32_0 : i32, i32, i32
  }
}

</mosaic_0001>

<llo_original>
// kernel: tile.8
$region0: #{tile.8}
  #allocation0 [shape = 's32[1]{0}', space=sflag, size = 0x4, scoped, tag = 'scoped memory for tile.8']
  %s0 = inlined_call_operand.vmem [shape: f32[8], index: 0, kind: input, shape index: {}]
  %s1 = inlined_call_operand.vmem [shape: f32[16,8], index: 1, kind: output, shape index: {}]
  // Predicated region
  $region2: #{tile.8} parent=0 // pred_check
    _
  $region3: #{tile.8} parent=0 // pred_check_branch
    %3 = sbr.rel (0) target = $region5
  $region4: #{tile.8} parent=0 // pred_region
    _
  $region5: #{tile.8} parent=0 // pred_fallthru
    _
  %v4 = vld [vmem:[%s0] ss:$0 sm:$0xff]
  %5 = vst [vmem:[%s1] sm:$0xff] %v4
  %s6 = scalar_lea.vmem %s1, 8
  %7 = vst [vmem:[%s6] sm:$0xff] %v4

// kernel: tile.9
$region0: #{tile.9}
  %s0 = inlined_call_operand.vmem [shape: f32[16,8], index: 0, kind: input, shape index: {}]
  %s1 = inlined_call_operand.vmem [shape: f32[1,128], index: 1, kind: output, shape index: {}]
  $region1: #{tile.9} parent=0
    #allocation0 [shape = 'u8[4096]{0}', space=vmem, size = 0x1000, scoped, tag = 'scoped mem for output reshape']
    %v2 = vld [vmem:[%s0] sm:$0x1]
    %vm3 = vcmask 64512
    %4 = vst.msk [vmem:[#allocation0] sm:$0x1] %vm3, %v2
    %s5 = scalar_lea.vmem %s0, 15
    %v6 = vld [vmem:[%s5] sm:$0x1]
    %7 = vrot.lane.b32.xlu0 %v6, 120
    %v8 = vpop.permute.xlu0 %7
    %vm9 = vcmask 1048512
    %10 = vst.msk [vmem:[#allocation0] sm:$0x1] %vm9, %v8
    %s11 = scalar_lea.vmem %s0, 14
    %v12 = vld [vmem:[%s11] sm:$0x1]
    %13 = vrot.lane.b32.xlu0 %v12, 112
    %v14 = vpop.permute.xlu0 %13
    %vm15 = vcmask 982912
    %16 = vst.msk [vmem:[#allocation0] sm:$0x1] %vm15, %v14
    %s17 = scalar_lea.vmem %s0, 13
    %v18 = vld [vmem:[%s17] sm:$0x1]
    %19 = vrot.lane.b32.xlu0 %v18, 104
    %v20 = vpop.permute.xlu0 %19
    %vm21 = vcmask 917312
    %22 = vst.msk [vmem:[#allocation0] sm:$0x1] %vm21, %v20
    %s23 = scalar_lea.vmem %s0, 12
    %v24 = vld [vmem:[%s23] sm:$0x1]
    %25 = vrot.lane.b32.xlu0 %v24, 96
    %v26 = vpop.permute.xlu0 %25
    %vm27 = vcmask 851712
    %28 = vst.msk [vmem:[#allocation0] sm:$0x1] %vm27, %v26
    %s29 = scalar_lea.vmem %s0, 11
    %v30 = vld [vmem:[%s29] sm:$0x1]
    %31 = vrot.lane.b32.xlu0 %v30, 88
    %v32 = vpop.permute.xlu0 %31
    %vm33 = vcmask 786112
    %34 = vst.msk [vmem:[#allocation0] sm:$0x1] %vm33, %v32
    %s35 = scalar_lea.vmem %s0, 10
    %v36 = vld [vmem:[%s35] sm:$0x1]
    %37 = vrot.lane.b32.xlu0 %v36, 80
    %v38 = vpop.permute.xlu0 %37
    %vm39 = vcmask 720512
    %40 = vst.msk [vmem:[#allocation0] sm:$0x1] %vm39, %v38
    %s41 = scalar_lea.vmem %s0, 9
    %v42 = vld [vmem:[%s41] sm:$0x1]
    %43 = vrot.lane.b32.xlu0 %v42, 72
    %v44 = vpop.permute.xlu0 %43
    %vm45 = vcmask 654912
    %46 = vst.msk [vmem:[#allocation0] sm:$0x1] %vm45, %v44
    %s47 = scalar_lea.vmem %s0, 8
    %v48 = vld [vmem:[%s47] sm:$0x1]
    %49 = vrot.lane.b32.xlu0 %v48, 64
    %v50 = vpop.permute.xlu0 %49
    %vm51 = vcmask 589312
    %52 = vst.msk [vmem:[#allocation0] sm:$0x1] %vm51, %v50
    %s53 = scalar_lea.vmem %s0, 7
    %v54 = vld [vmem:[%s53] sm:$0x1]
    %55 = vrot.lane.b32.xlu0 %v54, 56
    %v56 = vpop.permute.xlu0 %55
    %vm57 = vcmask 523712
    %58 = vst.msk [vmem:[#allocation0] sm:$0x1] %vm57, %v56
    %s59 = scalar_lea.vmem %s0, 6
    %v60 = vld [vmem:[%s59] sm:$0x1]
    %61 = vrot.lane.b32.xlu0 %v60, 48
    %v62 = vpop.permute.xlu0 %61
    %vm63 = vcmask 458112
    %64 = vst.msk [vmem:[#allocation0] sm:$0x1] %vm63, %v62
    %s65 = scalar_lea.vmem %s0, 5
    %v66 = vld [vmem:[%s65] sm:$0x1]
    %67 = vrot.lane.b32.xlu0 %v66, 40
    %v68 = vpop.permute.xlu0 %67
    %vm69 = vcmask 392512
    %70 = vst.msk [vmem:[#allocation0] sm:$0x1] %vm69, %v68
    %s71 = scalar_lea.vmem %s0, 4
    %v72 = vld [vmem:[%s71] sm:$0x1]
    %73 = vrot.lane.b32.xlu0 %v72, 32
    %v74 = vpop.permute.xlu0 %73
    %vm75 = vcmask 326912
    %76 = vst.msk [vmem:[#allocation0] sm:$0x1] %vm75, %v74
    %s77 = scalar_lea.vmem %s0, 3
    %v78 = vld [vmem:[%s77] sm:$0x1]
    %79 = vrot.lane.b32.xlu0 %v78, 24
    %v80 = vpop.permute.xlu0 %79
    %vm81 = vcmask 261312
    %82 = vst.msk [vmem:[#allocation0] sm:$0x1] %vm81, %v80
    %s83 = scalar_lea.vmem %s0, 2
    %v84 = vld [vmem:[%s83] sm:$0x1]
    %85 = vrot.lane.b32.xlu0 %v84, 16
    %v86 = vpop.permute.xlu0 %85
    %vm87 = vcmask 195712
    %88 = vst.msk [vmem:[#allocation0] sm:$0x1] %vm87, %v86
    %s89 = scalar_lea.vmem %s0, 1
    %v90 = vld [vmem:[%s89] sm:$0x1]
    %91 = vrot.lane.b32.xlu0 %v90, 8
    %v92 = vpop.permute.xlu0 %91
    %vm93 = vcmask 130112
    %94 = vst.msk [vmem:[#allocation0] sm:$0x1] %vm93, %v92
    %s96 = sshllo.u32 0, 1
    %v98 = vld [vmem:[#allocation0] sm:%s96]
    %s99 = sshllo.u32 0, 1
    %100 = vst [vmem:[%s1] sm:%s99] %v98

// kernel: conv_dropout_norm_nonlin.1
$region0: #{conv_dropout_norm_nonlin.1}
  #allocation0 [shape = 'u32[]', space=smem, size = 0x4, offset = 0x4, fixed_abs, tag = 'smem constant byte address 0x4 - core index']
  #allocation1 [shape = 'u32[144,128]{1,0:T(1,128)}', space=vmem, size = 0x12000, scoped, tag = 'internal scratch']
  %s0 = inlined_call_operand.vmem [shape: bf16[2,16,64], index: 0, kind: input, shape index: {}]
  %s1 = inlined_call_operand.vmem [shape: bf16[3,64,128], index: 1, kind: input, shape index: {}]
  %s2 = inlined_call_operand.vmem [shape: f32[1,128], index: 2, kind: input, shape index: {}]
  %s3 = inlined_call_operand.vmem [shape: f32[2,16,128], index: 3, kind: output, shape index: {}]
  %s4 = sld [smem:[#allocation0]]
  $region45: #{conv_dropout_norm_nonlin.1} parent=0
    _
  %s6 = ssub.s32 1, %s4
  %s7 = scalar_select 0, %s6, %s4
  loop: start=0, step=1, limit=4
  $region2: #{conv_dropout_norm_nonlin.1} parent=0 // loop_pre_header
    _
  $region3: #{conv_dropout_norm_nonlin.1} parent=0 // loop_header
    %s9 = sphi 0, %s13
    %p10 = scmp.ge.s32.totalorder %s9, 4
    %s19 = sphi 0, %s21
    %s22 = sphi 0, %s19
    %s23 = sphi 0, %s22
    %s39 = sphi 0, %s23
    %s43 = sphi 0, %s43
    %s45 = sphi 0, %s43
    %s46 = sphi 0, %s45
    %s60 = sphi 0, %s46
    %s64 = sphi 0, %s64
    %s66 = sphi 0, %s64
    %s67 = sphi 0, %s66
    %s81 = sphi 0, %s67
    %s87 = sphi 0, %s89
    %s90 = sphi 0, %s87
    %s91 = sphi 0, %s90
    %s107 = sphi 0, %s91
  $region4: #{conv_dropout_norm_nonlin.1} parent=0 // loop_header_branch
    %12 = sbr.rel (%p10) target = $region8
  $region5: #{conv_dropout_norm_nonlin.1} parent=0 // loop_body
    %s14 = ssub.s32 %s9, 1
    %s15 = ssub.s32 %s9, 2
    %s16 = sadd.s32 %s9, 1
    %s17 = ssub.s32 %s9, %s16
    %p18 = scmp.eq.s32.totalorder %s17, 0
    %s20 = sadd.s32 %s19, 1
    %s21 = scalar_select %p18, %s19, %s20
    %p24 = pneg %p18
    %p25 = scmp.eq.s32.totalorder %s9, 1
    %p26 = por %p24, %p25
    %p27 = scmp.ne.s32.totalorder %s19, %s22
    %p28 = scmp.eq.s32.totalorder %s9, 0
    %p29 = por %p27, %p28
    %p30 = scmp.ne.s32.totalorder %s19, %s22
    %p31 = scmp.eq.s32.totalorder %s14, 1
    %p32 = por %p30, %p31
    %p33 = scmp.ne.s32.totalorder %s22, %s23
    %p34 = scmp.eq.s32.totalorder %s14, 0
    %p35 = por %p33, %p34
    %p36 = scmp.ne.s32.totalorder %s22, %s23
    %p37 = scmp.eq.s32.totalorder %s15, 1
    %p38 = por %p36, %p37
    %p40 = scmp.ne.s32.totalorder %s23, %s39
    %p41 = scmp.eq.s32.totalorder %s15, 0
    %p42 = por %p40, %p41
    %s44 = sadd.s32 %s43, 1
    %p47 = scmp.eq.s32.totalorder %s9, 1
    %p48 = scmp.ne.s32.totalorder %s43, %s45
    %p49 = scmp.eq.s32.totalorder %s9, 0
    %p50 = por %p48, %p49
    %p51 = scmp.ne.s32.totalorder %s43, %s45
    %p52 = scmp.eq.s32.totalorder %s14, 1
    %p53 = por %p51, %p52
    %p54 = scmp.ne.s32.totalorder %s45, %s46
    %p55 = scmp.eq.s32.totalorder %s14, 0
    %p56 = por %p54, %p55
    %p57 = scmp.ne.s32.totalorder %s45, %s46
    %p58 = scmp.eq.s32.totalorder %s15, 1
    %p59 = por %p57, %p58
    %p61 = scmp.ne.s32.totalorder %s46, %s60
    %p62 = scmp.eq.s32.totalorder %s15, 0
    %p63 = por %p61, %p62
    %s65 = sadd.s32 %s64, 1
    %p68 = scmp.eq.s32.totalorder %s9, 1
    %p69 = scmp.ne.s32.totalorder %s64, %s66
    %p70 = scmp.eq.s32.totalorder %s9, 0
    %p71 = por %p69, %p70
    %p72 = scmp.ne.s32.totalorder %s64, %s66
    %p73 = scmp.eq.s32.totalorder %s14, 1
    %p74 = por %p72, %p73
    %p75 = scmp.ne.s32.totalorder %s66, %s67
    %p76 = scmp.eq.s32.totalorder %s14, 0
    %p77 = por %p75, %p76
    %p78 = scmp.ne.s32.totalorder %s66, %s67
    %p79 = scmp.eq.s32.totalorder %s15, 1
    %p80 = por %p78, %p79
    %p82 = scmp.ne.s32.totalorder %s67, %s81
    %p83 = scmp.eq.s32.totalorder %s15, 0
    %p84 = por %p82, %p83
    %s85 = ssub.s32 %s9, %s16
    %p86 = scmp.eq.s32.totalorder %s85, 0
    %s88 = sadd.s32 %s87, 1
    %s89 = scalar_select %p86, %s87, %s88
    %p92 = pneg %p86
    %p93 = scmp.eq.s32.totalorder %s9, 1
    %p94 = por %p92, %p93
    %p95 = scmp.ne.s32.totalorder %s87, %s90
    %p96 = scmp.eq.s32.totalorder %s9, 0
    %p97 = por %p95, %p96
    %p98 = scmp.ne.s32.totalorder %s87, %s90
    %p99 = scmp.eq.s32.totalorder %s14, 1
    %p100 = por %p98, %p99
    %p101 = scmp.ne.s32.totalorder %s90, %s91
    %p102 = scmp.eq.s32.totalorder %s14, 0
    %p103 = por %p101, %p102
    %p104 = scmp.ne.s32.totalorder %s90, %s91
    %p105 = scmp.eq.s32.totalorder %s15, 1
    %p106 = por %p104, %p105
    %p108 = scmp.ne.s32.totalorder %s91, %s107
    %p109 = scmp.eq.s32.totalorder %s15, 0
    %p110 = por %p108, %p109
    %p111 = scmp.le.s32.totalorder 1, %s9
    %p112 = scmp.lt.s32.totalorder %s9, 3
    %p113 = pnand %p111, %p112
    %p114 = pneg %p113
    // Predicated region
    $region9: #{conv_dropout_norm_nonlin.1} parent=5 // pred_check
      _
    $region10: #{conv_dropout_norm_nonlin.1} parent=5 // pred_check_branch
      %116 = sbr.rel (%p113) target = $region12
    $region11: #{conv_dropout_norm_nonlin.1} parent=5 // pred_region
      %s117 = ssub.s32 %s9, 1
      // Predicated region
      $region13: #{conv_dropout_norm_nonlin.1} parent=11 // pred_check
        %p118 = pneg %p56
      $region14: #{conv_dropout_norm_nonlin.1} parent=11 // pred_check_branch
        %120 = sbr.rel (%p118) target = $region16
      $region15: #{conv_dropout_norm_nonlin.1} parent=11 // pred_region
        _
      $region16: #{conv_dropout_norm_nonlin.1} parent=11 // pred_fallthru
        _
      // Predicated region
      $region17: #{conv_dropout_norm_nonlin.1} parent=11 // pred_check
        %p121 = pneg %p77
      $region18: #{conv_dropout_norm_nonlin.1} parent=11 // pred_check_branch
        %123 = sbr.rel (%p121) target = $region20
      $region19: #{conv_dropout_norm_nonlin.1} parent=11 // pred_region
        _
      $region20: #{conv_dropout_norm_nonlin.1} parent=11 // pred_fallthru
        _
    $region12: #{conv_dropout_norm_nonlin.1} parent=5 // pred_fallthru
      _
    %p124 = scmp.lt.s32.totalorder %s9, 2
    // Predicated region
    $region21: #{conv_dropout_norm_nonlin.1} parent=5 // pred_check
      %p125 = pneg %p124
    $region22: #{conv_dropout_norm_nonlin.1} parent=5 // pred_check_branch
      %127 = sbr.rel (%p125) target = $region24
    $region23: #{conv_dropout_norm_nonlin.1} parent=5 // pred_region
      // Predicated region
      $region25: #{conv_dropout_norm_nonlin.1} parent=23 // pred_check
        %p128 = pneg %p29
      $region26: #{conv_dropout_norm_nonlin.1} parent=23 // pred_check_branch
        %130 = sbr.rel (%p128) target = $region28
      $region27: #{conv_dropout_norm_nonlin.1} parent=23 // pred_region
        %p131 = scmp.lt.s32.totalorder %s9, 1
        %s132 = scalar_select %p131, %s9, 1
        %s133 = smul.addr %s132, 2
        %s134 = smul.addr %s133, 4
        %s135 = scalar_lea.vmem %s0, %s134
      $region28: #{conv_dropout_norm_nonlin.1} parent=23 // pred_fallthru
        _
    $region24: #{conv_dropout_norm_nonlin.1} parent=5 // pred_fallthru
      _
    %p136 = scmp.le.s32.totalorder 1, %s9
    %p137 = scmp.lt.s32.totalorder %s9, 3
    %p138 = pnand %p136, %p137
    %p139 = pneg %p138
    // Predicated region
    $region29: #{conv_dropout_norm_nonlin.1} parent=5 // pred_check
      _
    $region30: #{conv_dropout_norm_nonlin.1} parent=5 // pred_check_branch
      %141 = sbr.rel (%p138) target = $region32
    $region31: #{conv_dropout_norm_nonlin.1} parent=5 // pred_region
      %s142 = ssub.s32 %s9, 1
      %p143 = scmp.lt.s32.totalorder %s14, 1
      %s144 = scalar_select %p143, %s14, 1
      %s145 = smul.addr %s144, 2
      %s146 = smul.addr %s145, 4
      %s147 = scalar_lea.vmem %s0, %s146
      %p148 = pneg %p35
      %p149 = pneg %p32
      %p150 = pneg %p56
      %p151 = pneg %p53
      %p152 = pneg %p77
      %p153 = pneg %p74
      %p154 = pneg %p103
      %p155 = pneg %p100
      %p156 = scmp.lt.s32.totalorder %s14, 1
      %s157 = scalar_select %p156, %s14, 1
      %s158 = smul.addr %s157, 2
      %s159 = smul.addr %s158, 8
      %s160 = scalar_lea.vmem %s3, %s159
      %p161 = scmp.lt.s32.totalorder %s14, 1
      %s162 = scalar_select %p161, %s14, 1
      %s163 = smul.addr %s162, 2
      %s164 = smul.addr %s163, 4
      %s165 = scalar_lea.vmem %s0, %s164
      %p166 = scmp.lt.s32.totalorder %s14, 1
      %s167 = scalar_select %p166, %s14, 1
      %s168 = smul.addr %s167, 2
      %s169 = smul.addr %s168, 8
      %s170 = scalar_lea.vmem %s3, %s169
      %v172 = vld [vmem:[%s1] sm:$0xf]
      %v173 = vld [vmem:[%s1 + $0x4] sm:$0xf]
      %v174 = vld [vmem:[%s1 + $0x8] sm:$0xf]
      %v175 = vld [vmem:[%s1 + $0xc] sm:$0xf]
      %v176 = vld [vmem:[%s1 + $0x10] sm:$0xf]
      %v177 = vld [vmem:[%s1 + $0x14] sm:$0xf]
      %v178 = vld [vmem:[%s1 + $0x18] sm:$0xf]
      %v179 = vld [vmem:[%s1 + $0x1c] sm:$0xf]
      %s180 = scalar_lea.vmem %s1, 32
      %v181 = vld [vmem:[%s180] sm:$0xf]
      %v182 = vld [vmem:[%s180 + $0x4] sm:$0xf]
      %v183 = vld [vmem:[%s180 + $0x8] sm:$0xf]
      %v184 = vld [vmem:[%s180 + $0xc] sm:$0xf]
      %v185 = vld [vmem:[%s180 + $0x10] sm:$0xf]
      %v186 = vld [vmem:[%s180 + $0x14] sm:$0xf]
      %v187 = vld [vmem:[%s180 + $0x18] sm:$0xf]
      %v188 = vld [vmem:[%s180 + $0x1c] sm:$0xf]
      %s189 = scalar_lea.vmem %s1, 64
      %v190 = vld [vmem:[%s189] sm:$0xf]
      %v191 = vld [vmem:[%s189 + $0x4] sm:$0xf]
      %v192 = vld [vmem:[%s189 + $0x8] sm:$0xf]
      %v193 = vld [vmem:[%s189 + $0xc] sm:$0xf]
      %v194 = vld [vmem:[%s189 + $0x10] sm:$0xf]
      %v195 = vld [vmem:[%s189 + $0x14] sm:$0xf]
      %v196 = vld [vmem:[%s189 + $0x18] sm:$0xf]
      %v197 = vld [vmem:[%s189 + $0x1c] sm:$0xf]
      %v198 = vld [vmem:[%s2] sm:$0x1]
      %v199 = vlaneseq
      %v200 = vshrl.u32 %v199, 7
      %v201 = vadd.s32 %v200, 8
      %v202 = vlaneseq
      %v203 = vand.u32 %v202, 127
      %v204 = vadd.s32 %v203, 1
      %vm205 = vcmp.eq.s32.totalorder %v200, %v204
      %vm206 = vcmp.eq.s32.totalorder %v201, %v204
      %v207 = vsel %vm205, 1.0, 0.0
      %v208 = vsel %vm206, 1.0, 0.0
      %v209 = vpack.c.bf16 %v208, %v207
      %v210 = vadd.s32 %v200, 1
      %v211 = vadd.s32 %v201, 1
      %vm212 = vcmp.eq.s32.totalorder %v203, %v210
      %vm213 = vcmp.eq.s32.totalorder %v203, %v211
      %v214 = vsel %vm212, 1.0, 0.0
      %v215 = vsel %vm213, 1.0, 0.0
      %v216 = vpack.c.bf16 %v215, %v214
      %v217 = vld [vmem:[%s165] sm:$0xf]
      %v218 = vld [vmem:[%s165 + $0x4] sm:$0xf]
      %v221 = vunpack.c.l.b16 %v217
      %v222 = vunpack.c.l.b16 %v218
      %v223 = vpack.c.b16 %v222, %v221
      %vm225 = vcmask 130048
      %v227 = vsel %vm225, %v209, 0
      %229 = vmatprep.subr.bf16.mxu0 0
      %230 = vmatpush1.bf16.msra.mxu0 %v223
      %231 = vmatprep.subr.bf16.mxu0 0
      %232 = vmatpush1.bf16.msra.mxu0 0
      %233 = vmatprep.subr.bf16.mxu0 0
      %234 = vmatpush1.bf16.msra.mxu0 0
      %235 = vmatprep.subr.bf16.mxu0 0
      %236 = vmatpush1.bf16.msra.mxu0 0
      %237 = vmatprep.subr.bf16.mxu0 0
      %238 = vmatpush1.bf16.msra.mxu0 0
      %239 = vmatprep.subr.bf16.mxu0 0
      %240 = vmatpush1.bf16.msra.mxu0 0
      %241 = vmatprep.subr.bf16.mxu0 0
      %242 = vmatpush1.bf16.msra.mxu0 0
      %243 = vmatprep.subr.bf16.mxu0 0
      %244 = vmatpush1.bf16.msra.mxu0 0
      %245 = vmatprep.subr.bf16.mxu0 0
      %246 = vmatpush1.bf16.msra.mxu0 0
      %247 = vmatprep.subr.bf16.mxu0 0
      %248 = vmatpush1.bf16.msra.mxu0 0
      %249 = vmatprep.subr.bf16.mxu0 0
      %250 = vmatpush1.bf16.msra.mxu0 0
      %251 = vmatprep.subr.bf16.mxu0 0
      %252 = vmatpush1.bf16.msra.mxu0 0
      %253 = vmatprep.subr.bf16.mxu0 0
      %254 = vmatpush1.bf16.msra.mxu0 0
      %255 = vmatprep.subr.bf16.mxu0 0
      %256 = vmatpush1.bf16.msra.mxu0 0
      %257 = vmatprep.subr.bf16.mxu0 0
      %258 = vmatpush1.bf16.msra.mxu0 0
      %259 = vmatprep.subr.bf16.mxu0 0
      %260 = vmatpush1.bf16.msra.mxu0 0
      %261 = vmatprep.mubr.bf16.mxu0 0
      %262 = vmatmul.mubr.bf16.gmra.mrb[0].mxu0 %v227
      %v263 = vpop.f32.mrb[0].mxu0
      %v264 = vadd.f32 0.0, %v263
      %v265 = vpop.f32.mrb[0].mxu0
      %v266 = vpop.f32.mrb[0].mxu0
      %v267 = vadd.f32 0.0, %v266
      %v268 = vpop.f32.mrb[0].mxu0
      %269 = vdwg.mxu0
      %v270 = vpack.c.bf16 %v267, %v264
      %v272 = vsel %vm225, %v216, 0
      %274 = vmatprep.subr.bf16.mxu0 0
      %275 = vmatpush1.bf16.msra.mxu0 %v223
      %276 = vmatprep.subr.bf16.mxu0 0
      %277 = vmatpush1.bf16.msra.mxu0 0
      %278 = vmatprep.subr.bf16.mxu0 0
      %279 = vmatpush1.bf16.msra.mxu0 0
      %280 = vmatprep.subr.bf16.mxu0 0
      %281 = vmatpush1.bf16.msra.mxu0 0
      %282 = vmatprep.subr.bf16.mxu0 0
      %283 = vmatpush1.bf16.msra.mxu0 0
      %284 = vmatprep.subr.bf16.mxu0 0
      %285 = vmatpush1.bf16.msra.mxu0 0
      %286 = vmatprep.subr.bf16.mxu0 0
      %287 = vmatpush1.bf16.msra.mxu0 0
      %288 = vmatprep.subr.bf16.mxu0 0
      %289 = vmatpush1.bf16.msra.mxu0 0
      %290 = vmatprep.subr.bf16.mxu0 0
      %291 = vmatpush1.bf16.msra.mxu0 0
      %292 = vmatprep.subr.bf16.mxu0 0
      %293 = vmatpush1.bf16.msra.mxu0 0
      %294 = vmatprep.subr.bf16.mxu0 0
      %295 = vmatpush1.bf16.msra.mxu0 0
      %296 = vmatprep.subr.bf16.mxu0 0
      %297 = vmatpush1.bf16.msra.mxu0 0
      %298 = vmatprep.subr.bf16.mxu0 0
      %299 = vmatpush1.bf16.msra.mxu0 0
      %300 = vmatprep.subr.bf16.mxu0 0
      %301 = vmatpush1.bf16.msra.mxu0 0
      %302 = vmatprep.subr.bf16.mxu0 0
      %303 = vmatpush1.bf16.msra.mxu0 0
      %304 = vmatprep.subr.bf16.mxu0 0
      %305 = vmatpush1.bf16.msra.mxu0 0
      %306 = vmatprep.mubr.bf16.mxu0 0
      %307 = vmatmul.mubr.bf16.gmra.mrb[0].mxu0 %v272
      %v308 = vpop.f32.mrb[0].mxu0
      %v309 = vadd.f32 0.0, %v308
      %v310 = vpop.f32.mrb[0].mxu0
      %v311 = vpop.f32.mrb[0].mxu0
      %v312 = vadd.f32 0.0, %v311
      %v313 = vpop.f32.mrb[0].mxu0
      %314 = vdwg.mxu0
      %v315 = vpack.c.bf16 %v312, %v309
      %v324 = vunpack.c.l.b16 %v172
      %v325 = vunpack.c.l.b16 %v173
      %v326 = vunpack.c.l.b16 %v174
      %v327 = vunpack.c.l.b16 %v175
      %v328 = vunpack.c.l.b16 %v176
      %v329 = vunpack.c.l.b16 %v177
      %v330 = vunpack.c.l.b16 %v178
      %v331 = vunpack.c.l.b16 %v179
      %v332 = vpack.c.b16 %v325, %v324
      %v333 = vpack.c.b16 %v327, %v326
      %v334 = vpack.c.b16 %v329, %v328
      %v335 = vpack.c.b16 %v331, %v330
      %vm340 = vcmask 523264
      %v342 = vsel %vm340, %v270, 0
      %344 = vmatprep.subr.bf16.mxu0 0
      %345 = vmatpush1.bf16.msra.mxu0 %v332
      %346 = vmatprep.subr.bf16.mxu0 0
      %347 = vmatpush1.bf16.msra.mxu0 %v333
      %348 = vmatprep.subr.bf16.mxu0 0
      %349 = vmatpush1.bf16.msra.mxu0 %v334
      %350 = vmatprep.subr.bf16.mxu0 0
      %351 = vmatpush1.bf16.msra.mxu0 %v335
      %352 = vmatprep.subr.bf16.mxu0 0
      %353 = vmatpush1.bf16.msra.mxu0 0
      %354 = vmatprep.subr.bf16.mxu0 0
      %355 = vmatpush1.bf16.msra.mxu0 0
      %356 = vmatprep.subr.bf16.mxu0 0
      %357 = vmatpush1.bf16.msra.mxu0 0
      %358 = vmatprep.subr.bf16.mxu0 0
      %359 = vmatpush1.bf16.msra.mxu0 0
      %360 = vmatprep.subr.bf16.mxu0 0
      %361 = vmatpush1.bf16.msra.mxu0 0
      %362 = vmatprep.subr.bf16.mxu0 0
      %363 = vmatpush1.bf16.msra.mxu0 0
      %364 = vmatprep.subr.bf16.mxu0 0
      %365 = vmatpush1.bf16.msra.mxu0 0
      %366 = vmatprep.subr.bf16.mxu0 0
      %367 = vmatpush1.bf16.msra.mxu0 0
      %368 = vmatprep.subr.bf16.mxu0 0
      %369 = vmatpush1.bf16.msra.mxu0 0
      %370 = vmatprep.subr.bf16.mxu0 0
      %371 = vmatpush1.bf16.msra.mxu0 0
      %372 = vmatprep.subr.bf16.mxu0 0
      %373 = vmatpush1.bf16.msra.mxu0 0
      %374 = vmatprep.subr.bf16.mxu0 0
      %375 = vmatpush1.bf16.msra.mxu0 0
      %376 = vmatprep.mubr.bf16.mxu0 0
      %377 = vmatmul.mubr.bf16.gmra.mrb[0].mxu0 %v342
      %v378 = vpop.f32.mrb[0].mxu0
      %v379 = vadd.f32 0.0, %v378
      %v380 = vpop.f32.mrb[0].mxu0
      %v381 = vpop.f32.mrb[0].mxu0
      %v382 = vadd.f32 0.0, %v381
      %v383 = vpop.f32.mrb[0].mxu0
      %384 = vdwg.mxu0
      %v393 = vunpack.c.l.b16 %v181
      %v394 = vunpack.c.l.b16 %v182
      %v395 = vunpack.c.l.b16 %v183
      %v396 = vunpack.c.l.b16 %v184
      %v397 = vunpack.c.l.b16 %v185
      %v398 = vunpack.c.l.b16 %v186
      %v399 = vunpack.c.l.b16 %v187
      %v400 = vunpack.c.l.b16 %v188
      %v401 = vpack.c.b16 %v394, %v393
      %v402 = vpack.c.b16 %v396, %v395
      %v403 = vpack.c.b16 %v398, %v397
      %v404 = vpack.c.b16 %v400, %v399
      %v410 = vsel %vm340, %v223, 0
      %412 = vmatprep.subr.bf16.mxu0 0
      %413 = vmatpush1.bf16.msra.mxu0 %v401
      %414 = vmatprep.subr.bf16.mxu0 0
      %415 = vmatpush1.bf16.msra.mxu0 %v402
      %416 = vmatprep.subr.bf16.mxu0 0
      %417 = vmatpush1.bf16.msra.mxu0 %v403
      %418 = vmatprep.subr.bf16.mxu0 0
      %419 = vmatpush1.bf16.msra.mxu0 %v404
      %420 = vmatprep.subr.bf16.mxu0 0
      %421 = vmatpush1.bf16.msra.mxu0 0
      %422 = vmatprep.subr.bf16.mxu0 0
      %423 = vmatpush1.bf16.msra.mxu0 0
      %424 = vmatprep.subr.bf16.mxu0 0
      %425 = vmatpush1.bf16.msra.mxu0 0
      %426 = vmatprep.subr.bf16.mxu0 0
      %427 = vmatpush1.bf16.msra.mxu0 0
      %428 = vmatprep.subr.bf16.mxu0 0
      %429 = vmatpush1.bf16.msra.mxu0 0
      %430 = vmatprep.subr.bf16.mxu0 0
      %431 = vmatpush1.bf16.msra.mxu0 0
      %432 = vmatprep.subr.bf16.mxu0 0
      %433 = vmatpush1.bf16.msra.mxu0 0
      %434 = vmatprep.subr.bf16.mxu0 0
      %435 = vmatpush1.bf16.msra.mxu0 0
      %436 = vmatprep.subr.bf16.mxu0 0
      %437 = vmatpush1.bf16.msra.mxu0 0
      %438 = vmatprep.subr.bf16.mxu0 0
      %439 = vmatpush1.bf16.msra.mxu0 0
      %440 = vmatprep.subr.bf16.mxu0 0
      %441 = vmatpush1.bf16.msra.mxu0 0
      %442 = vmatprep.subr.bf16.mxu0 0
      %443 = vmatpush1.bf16.msra.mxu0 0
      %444 = vmatprep.mubr.bf16.mxu0 0
      %445 = vmatmul.mubr.bf16.gmra.mrb[0].mxu0 %v410
      %v446 = vpop.f32.mrb[0].mxu0
      %v447 = vadd.f32 %v379, %v446
      %v448 = vpop.f32.mrb[0].mxu0
      %v449 = vpop.f32.mrb[0].mxu0
      %v450 = vadd.f32 %v382, %v449
      %v451 = vpop.f32.mrb[0].mxu0
      %452 = vdwg.mxu0
      %v461 = vunpack.c.l.b16 %v190
      %v462 = vunpack.c.l.b16 %v191
      %v463 = vunpack.c.l.b16 %v192
      %v464 = vunpack.c.l.b16 %v193
      %v465 = vunpack.c.l.b16 %v194
      %v466 = vunpack.c.l.b16 %v195
      %v467 = vunpack.c.l.b16 %v196
      %v468 = vunpack.c.l.b16 %v197
      %v469 = vpack.c.b16 %v462, %v461
      %v470 = vpack.c.b16 %v464, %v463
      %v471 = vpack.c.b16 %v466, %v465
      %v472 = vpack.c.b16 %v468, %v467
      %v478 = vsel %vm340, %v315, 0
      %480 = vmatprep.subr.bf16.mxu0 0
      %481 = vmatpush1.bf16.msra.mxu0 %v469
      %482 = vmatprep.subr.bf16.mxu0 0
      %483 = vmatpush1.bf16.msra.mxu0 %v470
      %484 = vmatprep.subr.bf16.mxu0 0
      %485 = vmatpush1.bf16.msra.mxu0 %v471
      %486 = vmatprep.subr.bf16.mxu0 0
      %487 = vmatpush1.bf16.msra.mxu0 %v472
      %488 = vmatprep.subr.bf16.mxu0 0
      %489 = vmatpush1.bf16.msra.mxu0 0
      %490 = vmatprep.subr.bf16.mxu0 0
      %491 = vmatpush1.bf16.msra.mxu0 0
      %492 = vmatprep.subr.bf16.mxu0 0
      %493 = vmatpush1.bf16.msra.mxu0 0
      %494 = vmatprep.subr.bf16.mxu0 0
      %495 = vmatpush1.bf16.msra.mxu0 0
      %496 = vmatprep.subr.bf16.mxu0 0
      %497 = vmatpush1.bf16.msra.mxu0 0
      %498 = vmatprep.subr.bf16.mxu0 0
      %499 = vmatpush1.bf16.msra.mxu0 0
      %500 = vmatprep.subr.bf16.mxu0 0
      %501 = vmatpush1.bf16.msra.mxu0 0
      %502 = vmatprep.subr.bf16.mxu0 0
      %503 = vmatpush1.bf16.msra.mxu0 0
      %504 = vmatprep.subr.bf16.mxu0 0
      %505 = vmatpush1.bf16.msra.mxu0 0
      %506 = vmatprep.subr.bf16.mxu0 0
      %507 = vmatpush1.bf16.msra.mxu0 0
      %508 = vmatprep.subr.bf16.mxu0 0
      %509 = vmatpush1.bf16.msra.mxu0 0
      %510 = vmatprep.subr.bf16.mxu0 0
      %511 = vmatpush1.bf16.msra.mxu0 0
      %512 = vmatprep.mubr.bf16.mxu0 0
      %513 = vmatmul.mubr.bf16.gmra.mrb[0].mxu0 %v478
      %v514 = vpop.f32.mrb[0].mxu0
      %v515 = vadd.f32 0.0, %v514
      %v516 = vpop.f32.mrb[0].mxu0
      %v517 = vpop.f32.mrb[0].mxu0
      %v518 = vadd.f32 0.0, %v517
      %v519 = vpop.f32.mrb[0].mxu0
      %520 = vdwg.mxu0
      %v521 = vadd.f32 %v447, %v515
      %v522 = vadd.f32 %v450, %v518
      %v524 = vlaneseq
      %v525 = vshrl.u32 %v524, 7
      %v526 = vsub.s32 0, %v525
      %v527 = vrot.slane %v198, %v526
      %v529 = vadd.f32 %v521, %v527
      %v530 = vadd.f32 %v522, %v527
      %vm531 = vcmp.ge.f32.partialorder %v529, 0.0
      %vm532 = vcmp.ge.f32.partialorder %v530, 0.0
      %v533 = vmul.f32 %v529, 0.01
      %v534 = vmul.f32 %v530, 0.01
      %v535 = vsel %vm531, %v529, %v533
      %v536 = vsel %vm532, %v530, %v534
      %537 = vst [vmem:[%s170] sm:$0xff] %v535
      %538 = vst [vmem:[%s170 + $0x8] sm:$0xff] %v536
      %p539 = scmp.lt.s32.totalorder %s14, 1
      %s540 = scalar_select %p539, %s14, 1
      %s541 = smul.addr %s540, 2
      %s542 = smul.addr %s541, 8
      %s543 = scalar_lea.vmem %s3, %s542
      // Predicated region
      $region33: #{conv_dropout_norm_nonlin.1} parent=31 // pred_check
        %p544 = pneg %p100
      $region34: #{conv_dropout_norm_nonlin.1} parent=31 // pred_check_branch
        %546 = sbr.rel (%p544) target = $region36
      $region35: #{conv_dropout_norm_nonlin.1} parent=31 // pred_region
        _
      $region36: #{conv_dropout_norm_nonlin.1} parent=31 // pred_fallthru
        _
    $region32: #{conv_dropout_norm_nonlin.1} parent=5 // pred_fallthru
      _
    %p547 = scmp.le.s32.totalorder 2, %s9
    // Predicated region
    $region37: #{conv_dropout_norm_nonlin.1} parent=5 // pred_check
      %p548 = pneg %p547
    $region38: #{conv_dropout_norm_nonlin.1} parent=5 // pred_check_branch
      %550 = sbr.rel (%p548) target = $region40
    $region39: #{conv_dropout_norm_nonlin.1} parent=5 // pred_region
      %s551 = ssub.s32 %s9, 2
      // Predicated region
      $region41: #{conv_dropout_norm_nonlin.1} parent=39 // pred_check
        %p552 = pneg %p106
      $region42: #{conv_dropout_norm_nonlin.1} parent=39 // pred_check_branch
        %554 = sbr.rel (%p552) target = $region44
      $region43: #{conv_dropout_norm_nonlin.1} parent=39 // pred_region
        %p555 = scmp.lt.s32.totalorder %s15, 1
        %s556 = scalar_select %p555, %s15, 1
        %s557 = smul.addr %s556, 2
        %s558 = smul.addr %s557, 8
        %s559 = scalar_lea.vmem %s3, %s558
      $region44: #{conv_dropout_norm_nonlin.1} parent=39 // pred_fallthru
        _
    $region40: #{conv_dropout_norm_nonlin.1} parent=5 // pred_fallthru
      _
  $region6: #{conv_dropout_norm_nonlin.1} parent=0 // loop_footer
    %s13 = sadd.s32 1, %s9
  $region7: #{conv_dropout_norm_nonlin.1} parent=0 // loop_footer_branch
    %8 = sbr.rel target = $region3
  $region8: #{conv_dropout_norm_nonlin.1} parent=0 // loop_exit
    _

</llo_original>
